<compile_context>
chip_gen: v7x
topology: tpu7x:2x2x1
jax: 0.10.0
libtpu: 0.0.40
codegen_flags: <defaults>
</compile_context>

<pallas_src>
import math
import functools

import jax
import jax.numpy as jnp
from jax.experimental import pallas as pl
from jax.experimental.pallas import tpu as pltpu


def _level_params(H, W, n):
    """Mirror PyTorch: kernel=ceil(dim/n), stride=floor(dim/n), no padding."""
    kh = math.ceil(H / n)
    kw = math.ceil(W / n)
    sh = math.floor(H / n)
    sw = math.floor(W / n)
    oh = (H - kh) // sh + 1
    ow = (W - kw) // sw + 1
    return kh, kw, sh, sw, oh, ow


def _spp_kernel(x_ref, *out_refs, out_side, H, W):
    # x_ref block: (TB, H, W, TC)  -- channels-last, C on the lane axis.
    # out_refs[l] block: (TB, oh*ow, TC) -- lane-dense per-window rows.
    order = sorted(range(len(out_side)), key=lambda k: out_side[k], reverse=True)
    prev_n = None
    prev_wins = None  # dict (i, j) -> (TB, TC) exact max of that window
    for idx in order:
        n = out_side[idx]
        kh, kw, sh, sw, oh, ow = _level_params(H, W, n)
        # Coarse level can be derived from the finer one's window maxes iff
        # both levels' windows tile H, W exactly and the ratio is integral.
        derivable = (
            prev_n is not None
            and prev_n % n == 0
            and H % prev_n == 0 and W % prev_n == 0
            and H % n == 0 and W % n == 0
        )
        wins = {}
        if derivable:
            r = prev_n // n
            for i in range(oh):
                for j in range(ow):
                    m = None
                    for a in range(r):
                        for b in range(r):
                            f = prev_wins[(i * r + a, j * r + b)]
                            m = f if m is None else jnp.maximum(m, f)
                    wins[(i, j)] = m
        else:
            for i in range(oh):
                for j in range(ow):
                    rs, cs = i * sh, j * sw
                    win = x_ref[:, rs:rs + kh, cs:cs + kw, :]   # (TB, kh, kw, TC)
                    # elementwise (VPU) max tree over kh, one sublane reduce over kw
                    acc = win[:, 0]                              # (TB, kw, TC)
                    for a in range(1, kh):
                        acc = jnp.maximum(acc, win[:, a])
                    wins[(i, j)] = jnp.max(acc, axis=1)          # (TB, TC)
        # Direct lane-dense row stores (window index = i*ow + j, row-major).
        o_ref = out_refs[idx]
        for i in range(oh):
            for j in range(ow):
                o_ref[:, i * ow + j, :] = wins[(i, j)].astype(o_ref.dtype)
        prev_n, prev_wins = n, wins


def spatial_pyramid_pool2d(x, out_side=(1, 2, 4)):
    B, C, H, W = x.shape
    for n in out_side:
        if H < n or W < n:
            raise ValueError(
                f"SpatialPyramidPool2D requires H >= n and W >= n for every "
                f"pyramid level; got H={H}, W={W}, n={n}")

    # Channels-last so C sits on the 128-lane axis.
    x_cl = jnp.transpose(x, (0, 2, 3, 1))  # (B, H, W, C)
    itemsize = jnp.dtype(x.dtype).itemsize

    # Channel tile: bound VMEM per grid step (double-buffered inputs), so the
    # same kernel fits v5e/v6e (128 MiB) and v7x (64 MiB physical VMEM).
    in_budget = 4 * 1024 * 1024  # bytes per input block (x2 for double buffering)
    if C <= 128 or H * W * C * itemsize <= in_budget:
        tc = C
    else:
        tc = (in_budget // (H * W * itemsize)) // 128 * 128
        tc = int(min(C, max(128, tc)))
    n_c = pl.cdiv(C, tc)

    # Batch tile: pack several batch elements per grid step for small slabs
    # (amortizes ~0.35 us per-step overhead).
    block_bytes = H * W * tc * itemsize
    tb = int(max(1, min(B, (512 * 1024) // max(block_bytes, 1))))
    n_b = pl.cdiv(B, tb)

    level_hw = [_level_params(H, W, n)[-2:] for n in out_side]
    out_shapes = tuple(
        jax.ShapeDtypeStruct((B, oh * ow, C), x.dtype) for (oh, ow) in level_hw
    )
    out_specs = tuple(
        pl.BlockSpec((tb, oh * ow, tc), lambda b, c: (b, 0, c))
        for (oh, ow) in level_hw
    )

    kernel = functools.partial(_spp_kernel, out_side=tuple(out_side), H=H, W=W)

    ys = pl.pallas_call(
        kernel,
        grid_spec=pltpu.PrefetchScalarGridSpec(
            num_scalar_prefetch=0,
            grid=(n_b, n_c),
            in_specs=[pl.BlockSpec((tb, H, W, tc), lambda b, c: (b, 0, 0, c))],
            out_specs=out_specs,
        ),
        out_shape=out_shapes,
        compiler_params=pltpu.CompilerParams(
            dimension_semantics=("parallel", "parallel"),
            vmem_limit_bytes=32 * 1024 * 1024,
        ),
    )(x_cl)

    # Glue: back to torch's (B, C, oh, ow).view(B, -1) order, then concat.
    parts = [
        jnp.transpose(y, (0, 2, 1)).reshape(B, -1)
        for y, _ in zip(ys, level_hw)
    ]
    return jnp.concatenate(parts, axis=1)


def _reference_spp(x, out_side=(1, 2, 4)):
    """Pure-JAX reference, mirrors the PyTorch forward literally."""
    B, C, H, W = x.shape
    parts = []
    for n in out_side:
        kh, kw, sh, sw, oh, ow = _level_params(H, W, n)
        rows = []
        for i in range(oh):
            cols = []
            for j in range(ow):
                win = x[:, :, i * sh:i * sh + kh, j * sw:j * sw + kw]
                cols.append(jnp.max(win, axis=(2, 3)))  # (B, C)
            rows.append(jnp.stack(cols, axis=-1))        # (B, C, ow)
        lvl = jnp.stack(rows, axis=-2)                    # (B, C, oh, ow)
        parts.append(lvl.reshape(B, -1))
    return jnp.concatenate(parts, axis=1)


if __name__ == "__main__":
    key = jax.random.PRNGKey(0)
    B, C, H, W = 2, 4, 16, 16
    x = jax.random.normal(key, (B, C, H, W), dtype=jnp.float32)

    out = spatial_pyramid_pool2d(x, out_side=(1, 2, 4))
    out = jax.block_until_ready(out)

    ref = _reference_spp(x, out_side=(1, 2, 4))
    assert out.shape == (B, C * (1 + 4 + 16)), out.shape
    assert jnp.allclose(out, ref, atol=1e-6, rtol=1e-6), "mismatch vs reference"

    print("KERNEL_OK")
</pallas_src>

<mosaic_0001>
module attributes {stable_mosaic.version = 11 : i64} {
  func.func @_spp_kernel(%arg0: i32, %arg1: i32, %arg2: memref<2x16x16x4xf32, #tpu.memory_space<vmem>>, %arg3: memref<2x1x4xf32, #tpu.memory_space<vmem>>, %arg4: memref<2x4x4xf32, #tpu.memory_space<vmem>>, %arg5: memref<2x16x4xf32, #tpu.memory_space<vmem>>) attributes {dimension_semantics = [#tpu.dimension_semantics<parallel>, #tpu.dimension_semantics<parallel>], iteration_bounds = array<i64: 1, 1>, scalar_prefetch = 0 : i64, scratch_operands = 0 : i64, tpu.core_type = #tpu.core_type<tc>, window_params = [{transform_indices = @transform_0, window_bounds = array<i64: 2, 16, 16, 4>}, {transform_indices = @transform_1, window_bounds = array<i64: 2, 1, 4>}, {transform_indices = @transform_2, window_bounds = array<i64: 2, 4, 4>}, {transform_indices = @transform_3, window_bounds = array<i64: 2, 16, 4>}]} {
    %c0 = arith.constant 0 : index
    %c0_0 = arith.constant 0 : index
    %c0_1 = arith.constant 0 : index
    %c0_2 = arith.constant 0 : index
    %0 = vector.load %arg2[%c0, %c0_0, %c0_1, %c0_2] : memref<2x16x16x4xf32, #tpu.memory_space<vmem>>, vector<2x4x4x4xf32>
    %1 = vector.extract_strided_slice %0 {offsets = [0, 0, 0, 0], sizes = [2, 1, 4, 4], strides = [1, 1, 1, 1]} : vector<2x4x4x4xf32> to vector<2x1x4x4xf32>
    %2 = vector.shape_cast %1 : vector<2x1x4x4xf32> to vector<2x4x4xf32>
    %3 = vector.extract_strided_slice %0 {offsets = [0, 1, 0, 0], sizes = [2, 1, 4, 4], strides = [1, 1, 1, 1]} : vector<2x4x4x4xf32> to vector<2x1x4x4xf32>
    %4 = vector.shape_cast %3 : vector<2x1x4x4xf32> to vector<2x4x4xf32>
    %5 = arith.maximumf %2, %4 : vector<2x4x4xf32>
    %6 = vector.extract_strided_slice %0 {offsets = [0, 2, 0, 0], sizes = [2, 1, 4, 4], strides = [1, 1, 1, 1]} : vector<2x4x4x4xf32> to vector<2x1x4x4xf32>
    %7 = vector.shape_cast %6 : vector<2x1x4x4xf32> to vector<2x4x4xf32>
    %8 = arith.maximumf %5, %7 : vector<2x4x4xf32>
    %9 = vector.extract_strided_slice %0 {offsets = [0, 3, 0, 0], sizes = [2, 1, 4, 4], strides = [1, 1, 1, 1]} : vector<2x4x4x4xf32> to vector<2x1x4x4xf32>
    %10 = vector.shape_cast %9 : vector<2x1x4x4xf32> to vector<2x4x4xf32>
    %11 = arith.maximumf %8, %10 : vector<2x4x4xf32>
    %cst = arith.constant dense<0xFF800000> : vector<2x4xf32>
    %12 = vector.multi_reduction <maximumf>, %11, %cst [1] : vector<2x4x4xf32> to vector<2x4xf32>
    %c0_3 = arith.constant 0 : index
    %c0_4 = arith.constant 0 : index
    %c4 = arith.constant 4 : index
    %c0_5 = arith.constant 0 : index
    %13 = vector.load %arg2[%c0_3, %c0_4, %c4, %c0_5] : memref<2x16x16x4xf32, #tpu.memory_space<vmem>>, vector<2x4x4x4xf32>
    %14 = vector.extract_strided_slice %13 {offsets = [0, 0, 0, 0], sizes = [2, 1, 4, 4], strides = [1, 1, 1, 1]} : vector<2x4x4x4xf32> to vector<2x1x4x4xf32>
    %15 = vector.shape_cast %14 : vector<2x1x4x4xf32> to vector<2x4x4xf32>
    %16 = vector.extract_strided_slice %13 {offsets = [0, 1, 0, 0], sizes = [2, 1, 4, 4], strides = [1, 1, 1, 1]} : vector<2x4x4x4xf32> to vector<2x1x4x4xf32>
    %17 = vector.shape_cast %16 : vector<2x1x4x4xf32> to vector<2x4x4xf32>
    %18 = arith.maximumf %15, %17 : vector<2x4x4xf32>
    %19 = vector.extract_strided_slice %13 {offsets = [0, 2, 0, 0], sizes = [2, 1, 4, 4], strides = [1, 1, 1, 1]} : vector<2x4x4x4xf32> to vector<2x1x4x4xf32>
    %20 = vector.shape_cast %19 : vector<2x1x4x4xf32> to vector<2x4x4xf32>
    %21 = arith.maximumf %18, %20 : vector<2x4x4xf32>
    %22 = vector.extract_strided_slice %13 {offsets = [0, 3, 0, 0], sizes = [2, 1, 4, 4], strides = [1, 1, 1, 1]} : vector<2x4x4x4xf32> to vector<2x1x4x4xf32>
    %23 = vector.shape_cast %22 : vector<2x1x4x4xf32> to vector<2x4x4xf32>
    %24 = arith.maximumf %21, %23 : vector<2x4x4xf32>
    %cst_6 = arith.constant dense<0xFF800000> : vector<2x4xf32>
    %25 = vector.multi_reduction <maximumf>, %24, %cst_6 [1] : vector<2x4x4xf32> to vector<2x4xf32>
    %c0_7 = arith.constant 0 : index
    %c0_8 = arith.constant 0 : index
    %c8 = arith.constant 8 : index
    %c0_9 = arith.constant 0 : index
    %26 = vector.load %arg2[%c0_7, %c0_8, %c8, %c0_9] : memref<2x16x16x4xf32, #tpu.memory_space<vmem>>, vector<2x4x4x4xf32>
    %27 = vector.extract_strided_slice %26 {offsets = [0, 0, 0, 0], sizes = [2, 1, 4, 4], strides = [1, 1, 1, 1]} : vector<2x4x4x4xf32> to vector<2x1x4x4xf32>
    %28 = vector.shape_cast %27 : vector<2x1x4x4xf32> to vector<2x4x4xf32>
    %29 = vector.extract_strided_slice %26 {offsets = [0, 1, 0, 0], sizes = [2, 1, 4, 4], strides = [1, 1, 1, 1]} : vector<2x4x4x4xf32> to vector<2x1x4x4xf32>
    %30 = vector.shape_cast %29 : vector<2x1x4x4xf32> to vector<2x4x4xf32>
    %31 = arith.maximumf %28, %30 : vector<2x4x4xf32>
    %32 = vector.extract_strided_slice %26 {offsets = [0, 2, 0, 0], sizes = [2, 1, 4, 4], strides = [1, 1, 1, 1]} : vector<2x4x4x4xf32> to vector<2x1x4x4xf32>
    %33 = vector.shape_cast %32 : vector<2x1x4x4xf32> to vector<2x4x4xf32>
    %34 = arith.maximumf %31, %33 : vector<2x4x4xf32>
    %35 = vector.extract_strided_slice %26 {offsets = [0, 3, 0, 0], sizes = [2, 1, 4, 4], strides = [1, 1, 1, 1]} : vector<2x4x4x4xf32> to vector<2x1x4x4xf32>
    %36 = vector.shape_cast %35 : vector<2x1x4x4xf32> to vector<2x4x4xf32>
    %37 = arith.maximumf %34, %36 : vector<2x4x4xf32>
    %cst_10 = arith.constant dense<0xFF800000> : vector<2x4xf32>
    %38 = vector.multi_reduction <maximumf>, %37, %cst_10 [1] : vector<2x4x4xf32> to vector<2x4xf32>
    %c0_11 = arith.constant 0 : index
    %c0_12 = arith.constant 0 : index
    %c12 = arith.constant 12 : index
    %c0_13 = arith.constant 0 : index
    %39 = vector.load %arg2[%c0_11, %c0_12, %c12, %c0_13] : memref<2x16x16x4xf32, #tpu.memory_space<vmem>>, vector<2x4x4x4xf32>
    %40 = vector.extract_strided_slice %39 {offsets = [0, 0, 0, 0], sizes = [2, 1, 4, 4], strides = [1, 1, 1, 1]} : vector<2x4x4x4xf32> to vector<2x1x4x4xf32>
    %41 = vector.shape_cast %40 : vector<2x1x4x4xf32> to vector<2x4x4xf32>
    %42 = vector.extract_strided_slice %39 {offsets = [0, 1, 0, 0], sizes = [2, 1, 4, 4], strides = [1, 1, 1, 1]} : vector<2x4x4x4xf32> to vector<2x1x4x4xf32>
    %43 = vector.shape_cast %42 : vector<2x1x4x4xf32> to vector<2x4x4xf32>
    %44 = arith.maximumf %41, %43 : vector<2x4x4xf32>
    %45 = vector.extract_strided_slice %39 {offsets = [0, 2, 0, 0], sizes = [2, 1, 4, 4], strides = [1, 1, 1, 1]} : vector<2x4x4x4xf32> to vector<2x1x4x4xf32>
    %46 = vector.shape_cast %45 : vector<2x1x4x4xf32> to vector<2x4x4xf32>
    %47 = arith.maximumf %44, %46 : vector<2x4x4xf32>
    %48 = vector.extract_strided_slice %39 {offsets = [0, 3, 0, 0], sizes = [2, 1, 4, 4], strides = [1, 1, 1, 1]} : vector<2x4x4x4xf32> to vector<2x1x4x4xf32>
    %49 = vector.shape_cast %48 : vector<2x1x4x4xf32> to vector<2x4x4xf32>
    %50 = arith.maximumf %47, %49 : vector<2x4x4xf32>
    %cst_14 = arith.constant dense<0xFF800000> : vector<2x4xf32>
    %51 = vector.multi_reduction <maximumf>, %50, %cst_14 [1] : vector<2x4x4xf32> to vector<2x4xf32>
    %c0_15 = arith.constant 0 : index
    %c4_16 = arith.constant 4 : index
    %c0_17 = arith.constant 0 : index
    %c0_18 = arith.constant 0 : index
    %52 = vector.load %arg2[%c0_15, %c4_16, %c0_17, %c0_18] : memref<2x16x16x4xf32, #tpu.memory_space<vmem>>, vector<2x4x4x4xf32>
    %53 = vector.extract_strided_slice %52 {offsets = [0, 0, 0, 0], sizes = [2, 1, 4, 4], strides = [1, 1, 1, 1]} : vector<2x4x4x4xf32> to vector<2x1x4x4xf32>
    %54 = vector.shape_cast %53 : vector<2x1x4x4xf32> to vector<2x4x4xf32>
    %55 = vector.extract_strided_slice %52 {offsets = [0, 1, 0, 0], sizes = [2, 1, 4, 4], strides = [1, 1, 1, 1]} : vector<2x4x4x4xf32> to vector<2x1x4x4xf32>
    %56 = vector.shape_cast %55 : vector<2x1x4x4xf32> to vector<2x4x4xf32>
    %57 = arith.maximumf %54, %56 : vector<2x4x4xf32>
    %58 = vector.extract_strided_slice %52 {offsets = [0, 2, 0, 0], sizes = [2, 1, 4, 4], strides = [1, 1, 1, 1]} : vector<2x4x4x4xf32> to vector<2x1x4x4xf32>
    %59 = vector.shape_cast %58 : vector<2x1x4x4xf32> to vector<2x4x4xf32>
    %60 = arith.maximumf %57, %59 : vector<2x4x4xf32>
    %61 = vector.extract_strided_slice %52 {offsets = [0, 3, 0, 0], sizes = [2, 1, 4, 4], strides = [1, 1, 1, 1]} : vector<2x4x4x4xf32> to vector<2x1x4x4xf32>
    %62 = vector.shape_cast %61 : vector<2x1x4x4xf32> to vector<2x4x4xf32>
    %63 = arith.maximumf %60, %62 : vector<2x4x4xf32>
    %cst_19 = arith.constant dense<0xFF800000> : vector<2x4xf32>
    %64 = vector.multi_reduction <maximumf>, %63, %cst_19 [1] : vector<2x4x4xf32> to vector<2x4xf32>
    %c0_20 = arith.constant 0 : index
    %c4_21 = arith.constant 4 : index
    %c4_22 = arith.constant 4 : index
    %c0_23 = arith.constant 0 : index
    %65 = vector.load %arg2[%c0_20, %c4_21, %c4_22, %c0_23] : memref<2x16x16x4xf32, #tpu.memory_space<vmem>>, vector<2x4x4x4xf32>
    %66 = vector.extract_strided_slice %65 {offsets = [0, 0, 0, 0], sizes = [2, 1, 4, 4], strides = [1, 1, 1, 1]} : vector<2x4x4x4xf32> to vector<2x1x4x4xf32>
    %67 = vector.shape_cast %66 : vector<2x1x4x4xf32> to vector<2x4x4xf32>
    %68 = vector.extract_strided_slice %65 {offsets = [0, 1, 0, 0], sizes = [2, 1, 4, 4], strides = [1, 1, 1, 1]} : vector<2x4x4x4xf32> to vector<2x1x4x4xf32>
    %69 = vector.shape_cast %68 : vector<2x1x4x4xf32> to vector<2x4x4xf32>
    %70 = arith.maximumf %67, %69 : vector<2x4x4xf32>
    %71 = vector.extract_strided_slice %65 {offsets = [0, 2, 0, 0], sizes = [2, 1, 4, 4], strides = [1, 1, 1, 1]} : vector<2x4x4x4xf32> to vector<2x1x4x4xf32>
    %72 = vector.shape_cast %71 : vector<2x1x4x4xf32> to vector<2x4x4xf32>
    %73 = arith.maximumf %70, %72 : vector<2x4x4xf32>
    %74 = vector.extract_strided_slice %65 {offsets = [0, 3, 0, 0], sizes = [2, 1, 4, 4], strides = [1, 1, 1, 1]} : vector<2x4x4x4xf32> to vector<2x1x4x4xf32>
    %75 = vector.shape_cast %74 : vector<2x1x4x4xf32> to vector<2x4x4xf32>
    %76 = arith.maximumf %73, %75 : vector<2x4x4xf32>
    %cst_24 = arith.constant dense<0xFF800000> : vector<2x4xf32>
    %77 = vector.multi_reduction <maximumf>, %76, %cst_24 [1] : vector<2x4x4xf32> to vector<2x4xf32>
    %c0_25 = arith.constant 0 : index
    %c4_26 = arith.constant 4 : index
    %c8_27 = arith.constant 8 : index
    %c0_28 = arith.constant 0 : index
    %78 = vector.load %arg2[%c0_25, %c4_26, %c8_27, %c0_28] : memref<2x16x16x4xf32, #tpu.memory_space<vmem>>, vector<2x4x4x4xf32>
    %79 = vector.extract_strided_slice %78 {offsets = [0, 0, 0, 0], sizes = [2, 1, 4, 4], strides = [1, 1, 1, 1]} : vector<2x4x4x4xf32> to vector<2x1x4x4xf32>
    %80 = vector.shape_cast %79 : vector<2x1x4x4xf32> to vector<2x4x4xf32>
    %81 = vector.extract_strided_slice %78 {offsets = [0, 1, 0, 0], sizes = [2, 1, 4, 4], strides = [1, 1, 1, 1]} : vector<2x4x4x4xf32> to vector<2x1x4x4xf32>
    %82 = vector.shape_cast %81 : vector<2x1x4x4xf32> to vector<2x4x4xf32>
    %83 = arith.maximumf %80, %82 : vector<2x4x4xf32>
    %84 = vector.extract_strided_slice %78 {offsets = [0, 2, 0, 0], sizes = [2, 1, 4, 4], strides = [1, 1, 1, 1]} : vector<2x4x4x4xf32> to vector<2x1x4x4xf32>
    %85 = vector.shape_cast %84 : vector<2x1x4x4xf32> to vector<2x4x4xf32>
    %86 = arith.maximumf %83, %85 : vector<2x4x4xf32>
    %87 = vector.extract_strided_slice %78 {offsets = [0, 3, 0, 0], sizes = [2, 1, 4, 4], strides = [1, 1, 1, 1]} : vector<2x4x4x4xf32> to vector<2x1x4x4xf32>
    %88 = vector.shape_cast %87 : vector<2x1x4x4xf32> to vector<2x4x4xf32>
    %89 = arith.maximumf %86, %88 : vector<2x4x4xf32>
    %cst_29 = arith.constant dense<0xFF800000> : vector<2x4xf32>
    %90 = vector.multi_reduction <maximumf>, %89, %cst_29 [1] : vector<2x4x4xf32> to vector<2x4xf32>
    %c0_30 = arith.constant 0 : index
    %c4_31 = arith.constant 4 : index
    %c12_32 = arith.constant 12 : index
    %c0_33 = arith.constant 0 : index
    %91 = vector.load %arg2[%c0_30, %c4_31, %c12_32, %c0_33] : memref<2x16x16x4xf32, #tpu.memory_space<vmem>>, vector<2x4x4x4xf32>
    %92 = vector.extract_strided_slice %91 {offsets = [0, 0, 0, 0], sizes = [2, 1, 4, 4], strides = [1, 1, 1, 1]} : vector<2x4x4x4xf32> to vector<2x1x4x4xf32>
    %93 = vector.shape_cast %92 : vector<2x1x4x4xf32> to vector<2x4x4xf32>
    %94 = vector.extract_strided_slice %91 {offsets = [0, 1, 0, 0], sizes = [2, 1, 4, 4], strides = [1, 1, 1, 1]} : vector<2x4x4x4xf32> to vector<2x1x4x4xf32>
    %95 = vector.shape_cast %94 : vector<2x1x4x4xf32> to vector<2x4x4xf32>
    %96 = arith.maximumf %93, %95 : vector<2x4x4xf32>
    %97 = vector.extract_strided_slice %91 {offsets = [0, 2, 0, 0], sizes = [2, 1, 4, 4], strides = [1, 1, 1, 1]} : vector<2x4x4x4xf32> to vector<2x1x4x4xf32>
    %98 = vector.shape_cast %97 : vector<2x1x4x4xf32> to vector<2x4x4xf32>
    %99 = arith.maximumf %96, %98 : vector<2x4x4xf32>
    %100 = vector.extract_strided_slice %91 {offsets = [0, 3, 0, 0], sizes = [2, 1, 4, 4], strides = [1, 1, 1, 1]} : vector<2x4x4x4xf32> to vector<2x1x4x4xf32>
    %101 = vector.shape_cast %100 : vector<2x1x4x4xf32> to vector<2x4x4xf32>
    %102 = arith.maximumf %99, %101 : vector<2x4x4xf32>
    %cst_34 = arith.constant dense<0xFF800000> : vector<2x4xf32>
    %103 = vector.multi_reduction <maximumf>, %102, %cst_34 [1] : vector<2x4x4xf32> to vector<2x4xf32>
    %c0_35 = arith.constant 0 : index
    %c8_36 = arith.constant 8 : index
    %c0_37 = arith.constant 0 : index
    %c0_38 = arith.constant 0 : index
    %104 = vector.load %arg2[%c0_35, %c8_36, %c0_37, %c0_38] : memref<2x16x16x4xf32, #tpu.memory_space<vmem>>, vector<2x4x4x4xf32>
    %105 = vector.extract_strided_slice %104 {offsets = [0, 0, 0, 0], sizes = [2, 1, 4, 4], strides = [1, 1, 1, 1]} : vector<2x4x4x4xf32> to vector<2x1x4x4xf32>
    %106 = vector.shape_cast %105 : vector<2x1x4x4xf32> to vector<2x4x4xf32>
    %107 = vector.extract_strided_slice %104 {offsets = [0, 1, 0, 0], sizes = [2, 1, 4, 4], strides = [1, 1, 1, 1]} : vector<2x4x4x4xf32> to vector<2x1x4x4xf32>
    %108 = vector.shape_cast %107 : vector<2x1x4x4xf32> to vector<2x4x4xf32>
    %109 = arith.maximumf %106, %108 : vector<2x4x4xf32>
    %110 = vector.extract_strided_slice %104 {offsets = [0, 2, 0, 0], sizes = [2, 1, 4, 4], strides = [1, 1, 1, 1]} : vector<2x4x4x4xf32> to vector<2x1x4x4xf32>
    %111 = vector.shape_cast %110 : vector<2x1x4x4xf32> to vector<2x4x4xf32>
    %112 = arith.maximumf %109, %111 : vector<2x4x4xf32>
    %113 = vector.extract_strided_slice %104 {offsets = [0, 3, 0, 0], sizes = [2, 1, 4, 4], strides = [1, 1, 1, 1]} : vector<2x4x4x4xf32> to vector<2x1x4x4xf32>
    %114 = vector.shape_cast %113 : vector<2x1x4x4xf32> to vector<2x4x4xf32>
    %115 = arith.maximumf %112, %114 : vector<2x4x4xf32>
    %cst_39 = arith.constant dense<0xFF800000> : vector<2x4xf32>
    %116 = vector.multi_reduction <maximumf>, %115, %cst_39 [1] : vector<2x4x4xf32> to vector<2x4xf32>
    %c0_40 = arith.constant 0 : index
    %c8_41 = arith.constant 8 : index
    %c4_42 = arith.constant 4 : index
    %c0_43 = arith.constant 0 : index
    %117 = vector.load %arg2[%c0_40, %c8_41, %c4_42, %c0_43] : memref<2x16x16x4xf32, #tpu.memory_space<vmem>>, vector<2x4x4x4xf32>
    %118 = vector.extract_strided_slice %117 {offsets = [0, 0, 0, 0], sizes = [2, 1, 4, 4], strides = [1, 1, 1, 1]} : vector<2x4x4x4xf32> to vector<2x1x4x4xf32>
    %119 = vector.shape_cast %118 : vector<2x1x4x4xf32> to vector<2x4x4xf32>
    %120 = vector.extract_strided_slice %117 {offsets = [0, 1, 0, 0], sizes = [2, 1, 4, 4], strides = [1, 1, 1, 1]} : vector<2x4x4x4xf32> to vector<2x1x4x4xf32>
    %121 = vector.shape_cast %120 : vector<2x1x4x4xf32> to vector<2x4x4xf32>
    %122 = arith.maximumf %119, %121 : vector<2x4x4xf32>
    %123 = vector.extract_strided_slice %117 {offsets = [0, 2, 0, 0], sizes = [2, 1, 4, 4], strides = [1, 1, 1, 1]} : vector<2x4x4x4xf32> to vector<2x1x4x4xf32>
    %124 = vector.shape_cast %123 : vector<2x1x4x4xf32> to vector<2x4x4xf32>
    %125 = arith.maximumf %122, %124 : vector<2x4x4xf32>
    %126 = vector.extract_strided_slice %117 {offsets = [0, 3, 0, 0], sizes = [2, 1, 4, 4], strides = [1, 1, 1, 1]} : vector<2x4x4x4xf32> to vector<2x1x4x4xf32>
    %127 = vector.shape_cast %126 : vector<2x1x4x4xf32> to vector<2x4x4xf32>
    %128 = arith.maximumf %125, %127 : vector<2x4x4xf32>
    %cst_44 = arith.constant dense<0xFF800000> : vector<2x4xf32>
    %129 = vector.multi_reduction <maximumf>, %128, %cst_44 [1] : vector<2x4x4xf32> to vector<2x4xf32>
    %c0_45 = arith.constant 0 : index
    %c8_46 = arith.constant 8 : index
    %c8_47 = arith.constant 8 : index
    %c0_48 = arith.constant 0 : index
    %130 = vector.load %arg2[%c0_45, %c8_46, %c8_47, %c0_48] : memref<2x16x16x4xf32, #tpu.memory_space<vmem>>, vector<2x4x4x4xf32>
    %131 = vector.extract_strided_slice %130 {offsets = [0, 0, 0, 0], sizes = [2, 1, 4, 4], strides = [1, 1, 1, 1]} : vector<2x4x4x4xf32> to vector<2x1x4x4xf32>
    %132 = vector.shape_cast %131 : vector<2x1x4x4xf32> to vector<2x4x4xf32>
    %133 = vector.extract_strided_slice %130 {offsets = [0, 1, 0, 0], sizes = [2, 1, 4, 4], strides = [1, 1, 1, 1]} : vector<2x4x4x4xf32> to vector<2x1x4x4xf32>
    %134 = vector.shape_cast %133 : vector<2x1x4x4xf32> to vector<2x4x4xf32>
    %135 = arith.maximumf %132, %134 : vector<2x4x4xf32>
    %136 = vector.extract_strided_slice %130 {offsets = [0, 2, 0, 0], sizes = [2, 1, 4, 4], strides = [1, 1, 1, 1]} : vector<2x4x4x4xf32> to vector<2x1x4x4xf32>
    %137 = vector.shape_cast %136 : vector<2x1x4x4xf32> to vector<2x4x4xf32>
    %138 = arith.maximumf %135, %137 : vector<2x4x4xf32>
    %139 = vector.extract_strided_slice %130 {offsets = [0, 3, 0, 0], sizes = [2, 1, 4, 4], strides = [1, 1, 1, 1]} : vector<2x4x4x4xf32> to vector<2x1x4x4xf32>
    %140 = vector.shape_cast %139 : vector<2x1x4x4xf32> to vector<2x4x4xf32>
    %141 = arith.maximumf %138, %140 : vector<2x4x4xf32>
    %cst_49 = arith.constant dense<0xFF800000> : vector<2x4xf32>
    %142 = vector.multi_reduction <maximumf>, %141, %cst_49 [1] : vector<2x4x4xf32> to vector<2x4xf32>
    %c0_50 = arith.constant 0 : index
    %c8_51 = arith.constant 8 : index
    %c12_52 = arith.constant 12 : index
    %c0_53 = arith.constant 0 : index
    %143 = vector.load %arg2[%c0_50, %c8_51, %c12_52, %c0_53] : memref<2x16x16x4xf32, #tpu.memory_space<vmem>>, vector<2x4x4x4xf32>
    %144 = vector.extract_strided_slice %143 {offsets = [0, 0, 0, 0], sizes = [2, 1, 4, 4], strides = [1, 1, 1, 1]} : vector<2x4x4x4xf32> to vector<2x1x4x4xf32>
    %145 = vector.shape_cast %144 : vector<2x1x4x4xf32> to vector<2x4x4xf32>
    %146 = vector.extract_strided_slice %143 {offsets = [0, 1, 0, 0], sizes = [2, 1, 4, 4], strides = [1, 1, 1, 1]} : vector<2x4x4x4xf32> to vector<2x1x4x4xf32>
    %147 = vector.shape_cast %146 : vector<2x1x4x4xf32> to vector<2x4x4xf32>
    %148 = arith.maximumf %145, %147 : vector<2x4x4xf32>
    %149 = vector.extract_strided_slice %143 {offsets = [0, 2, 0, 0], sizes = [2, 1, 4, 4], strides = [1, 1, 1, 1]} : vector<2x4x4x4xf32> to vector<2x1x4x4xf32>
    %150 = vector.shape_cast %149 : vector<2x1x4x4xf32> to vector<2x4x4xf32>
    %151 = arith.maximumf %148, %150 : vector<2x4x4xf32>
    %152 = vector.extract_strided_slice %143 {offsets = [0, 3, 0, 0], sizes = [2, 1, 4, 4], strides = [1, 1, 1, 1]} : vector<2x4x4x4xf32> to vector<2x1x4x4xf32>
    %153 = vector.shape_cast %152 : vector<2x1x4x4xf32> to vector<2x4x4xf32>
    %154 = arith.maximumf %151, %153 : vector<2x4x4xf32>
    %cst_54 = arith.constant dense<0xFF800000> : vector<2x4xf32>
    %155 = vector.multi_reduction <maximumf>, %154, %cst_54 [1] : vector<2x4x4xf32> to vector<2x4xf32>
    %c0_55 = arith.constant 0 : index
    %c12_56 = arith.constant 12 : index
    %c0_57 = arith.constant 0 : index
    %c0_58 = arith.constant 0 : index
    %156 = vector.load %arg2[%c0_55, %c12_56, %c0_57, %c0_58] : memref<2x16x16x4xf32, #tpu.memory_space<vmem>>, vector<2x4x4x4xf32>
    %157 = vector.extract_strided_slice %156 {offsets = [0, 0, 0, 0], sizes = [2, 1, 4, 4], strides = [1, 1, 1, 1]} : vector<2x4x4x4xf32> to vector<2x1x4x4xf32>
    %158 = vector.shape_cast %157 : vector<2x1x4x4xf32> to vector<2x4x4xf32>
    %159 = vector.extract_strided_slice %156 {offsets = [0, 1, 0, 0], sizes = [2, 1, 4, 4], strides = [1, 1, 1, 1]} : vector<2x4x4x4xf32> to vector<2x1x4x4xf32>
    %160 = vector.shape_cast %159 : vector<2x1x4x4xf32> to vector<2x4x4xf32>
    %161 = arith.maximumf %158, %160 : vector<2x4x4xf32>
    %162 = vector.extract_strided_slice %156 {offsets = [0, 2, 0, 0], sizes = [2, 1, 4, 4], strides = [1, 1, 1, 1]} : vector<2x4x4x4xf32> to vector<2x1x4x4xf32>
    %163 = vector.shape_cast %162 : vector<2x1x4x4xf32> to vector<2x4x4xf32>
    %164 = arith.maximumf %161, %163 : vector<2x4x4xf32>
    %165 = vector.extract_strided_slice %156 {offsets = [0, 3, 0, 0], sizes = [2, 1, 4, 4], strides = [1, 1, 1, 1]} : vector<2x4x4x4xf32> to vector<2x1x4x4xf32>
    %166 = vector.shape_cast %165 : vector<2x1x4x4xf32> to vector<2x4x4xf32>
    %167 = arith.maximumf %164, %166 : vector<2x4x4xf32>
    %cst_59 = arith.constant dense<0xFF800000> : vector<2x4xf32>
    %168 = vector.multi_reduction <maximumf>, %167, %cst_59 [1] : vector<2x4x4xf32> to vector<2x4xf32>
    %c0_60 = arith.constant 0 : index
    %c12_61 = arith.constant 12 : index
    %c4_62 = arith.constant 4 : index
    %c0_63 = arith.constant 0 : index
    %169 = vector.load %arg2[%c0_60, %c12_61, %c4_62, %c0_63] : memref<2x16x16x4xf32, #tpu.memory_space<vmem>>, vector<2x4x4x4xf32>
    %170 = vector.extract_strided_slice %169 {offsets = [0, 0, 0, 0], sizes = [2, 1, 4, 4], strides = [1, 1, 1, 1]} : vector<2x4x4x4xf32> to vector<2x1x4x4xf32>
    %171 = vector.shape_cast %170 : vector<2x1x4x4xf32> to vector<2x4x4xf32>
    %172 = vector.extract_strided_slice %169 {offsets = [0, 1, 0, 0], sizes = [2, 1, 4, 4], strides = [1, 1, 1, 1]} : vector<2x4x4x4xf32> to vector<2x1x4x4xf32>
    %173 = vector.shape_cast %172 : vector<2x1x4x4xf32> to vector<2x4x4xf32>
    %174 = arith.maximumf %171, %173 : vector<2x4x4xf32>
    %175 = vector.extract_strided_slice %169 {offsets = [0, 2, 0, 0], sizes = [2, 1, 4, 4], strides = [1, 1, 1, 1]} : vector<2x4x4x4xf32> to vector<2x1x4x4xf32>
    %176 = vector.shape_cast %175 : vector<2x1x4x4xf32> to vector<2x4x4xf32>
    %177 = arith.maximumf %174, %176 : vector<2x4x4xf32>
    %178 = vector.extract_strided_slice %169 {offsets = [0, 3, 0, 0], sizes = [2, 1, 4, 4], strides = [1, 1, 1, 1]} : vector<2x4x4x4xf32> to vector<2x1x4x4xf32>
    %179 = vector.shape_cast %178 : vector<2x1x4x4xf32> to vector<2x4x4xf32>
    %180 = arith.maximumf %177, %179 : vector<2x4x4xf32>
    %cst_64 = arith.constant dense<0xFF800000> : vector<2x4xf32>
    %181 = vector.multi_reduction <maximumf>, %180, %cst_64 [1] : vector<2x4x4xf32> to vector<2x4xf32>
    %c0_65 = arith.constant 0 : index
    %c12_66 = arith.constant 12 : index
    %c8_67 = arith.constant 8 : index
    %c0_68 = arith.constant 0 : index
    %182 = vector.load %arg2[%c0_65, %c12_66, %c8_67, %c0_68] : memref<2x16x16x4xf32, #tpu.memory_space<vmem>>, vector<2x4x4x4xf32>
    %183 = vector.extract_strided_slice %182 {offsets = [0, 0, 0, 0], sizes = [2, 1, 4, 4], strides = [1, 1, 1, 1]} : vector<2x4x4x4xf32> to vector<2x1x4x4xf32>
    %184 = vector.shape_cast %183 : vector<2x1x4x4xf32> to vector<2x4x4xf32>
    %185 = vector.extract_strided_slice %182 {offsets = [0, 1, 0, 0], sizes = [2, 1, 4, 4], strides = [1, 1, 1, 1]} : vector<2x4x4x4xf32> to vector<2x1x4x4xf32>
    %186 = vector.shape_cast %185 : vector<2x1x4x4xf32> to vector<2x4x4xf32>
    %187 = arith.maximumf %184, %186 : vector<2x4x4xf32>
    %188 = vector.extract_strided_slice %182 {offsets = [0, 2, 0, 0], sizes = [2, 1, 4, 4], strides = [1, 1, 1, 1]} : vector<2x4x4x4xf32> to vector<2x1x4x4xf32>
    %189 = vector.shape_cast %188 : vector<2x1x4x4xf32> to vector<2x4x4xf32>
    %190 = arith.maximumf %187, %189 : vector<2x4x4xf32>
    %191 = vector.extract_strided_slice %182 {offsets = [0, 3, 0, 0], sizes = [2, 1, 4, 4], strides = [1, 1, 1, 1]} : vector<2x4x4x4xf32> to vector<2x1x4x4xf32>
    %192 = vector.shape_cast %191 : vector<2x1x4x4xf32> to vector<2x4x4xf32>
    %193 = arith.maximumf %190, %192 : vector<2x4x4xf32>
    %cst_69 = arith.constant dense<0xFF800000> : vector<2x4xf32>
    %194 = vector.multi_reduction <maximumf>, %193, %cst_69 [1] : vector<2x4x4xf32> to vector<2x4xf32>
    %c0_70 = arith.constant 0 : index
    %c12_71 = arith.constant 12 : index
    %c12_72 = arith.constant 12 : index
    %c0_73 = arith.constant 0 : index
    %195 = vector.load %arg2[%c0_70, %c12_71, %c12_72, %c0_73] : memref<2x16x16x4xf32, #tpu.memory_space<vmem>>, vector<2x4x4x4xf32>
    %196 = vector.extract_strided_slice %195 {offsets = [0, 0, 0, 0], sizes = [2, 1, 4, 4], strides = [1, 1, 1, 1]} : vector<2x4x4x4xf32> to vector<2x1x4x4xf32>
    %197 = vector.shape_cast %196 : vector<2x1x4x4xf32> to vector<2x4x4xf32>
    %198 = vector.extract_strided_slice %195 {offsets = [0, 1, 0, 0], sizes = [2, 1, 4, 4], strides = [1, 1, 1, 1]} : vector<2x4x4x4xf32> to vector<2x1x4x4xf32>
    %199 = vector.shape_cast %198 : vector<2x1x4x4xf32> to vector<2x4x4xf32>
    %200 = arith.maximumf %197, %199 : vector<2x4x4xf32>
    %201 = vector.extract_strided_slice %195 {offsets = [0, 2, 0, 0], sizes = [2, 1, 4, 4], strides = [1, 1, 1, 1]} : vector<2x4x4x4xf32> to vector<2x1x4x4xf32>
    %202 = vector.shape_cast %201 : vector<2x1x4x4xf32> to vector<2x4x4xf32>
    %203 = arith.maximumf %200, %202 : vector<2x4x4xf32>
    %204 = vector.extract_strided_slice %195 {offsets = [0, 3, 0, 0], sizes = [2, 1, 4, 4], strides = [1, 1, 1, 1]} : vector<2x4x4x4xf32> to vector<2x1x4x4xf32>
    %205 = vector.shape_cast %204 : vector<2x1x4x4xf32> to vector<2x4x4xf32>
    %206 = arith.maximumf %203, %205 : vector<2x4x4xf32>
    %cst_74 = arith.constant dense<0xFF800000> : vector<2x4xf32>
    %207 = vector.multi_reduction <maximumf>, %206, %cst_74 [1] : vector<2x4x4xf32> to vector<2x4xf32>
    %c0_75 = arith.constant 0 : index
    %c0_76 = arith.constant 0 : index
    %c0_77 = arith.constant 0 : index
    %208 = vector.load %arg5[%c0_75, %c0_76, %c0_77] : memref<2x16x4xf32, #tpu.memory_space<vmem>>, vector<2x1x4xf32>
    %209 = vector.shape_cast %208 : vector<2x1x4xf32> to vector<2x4xf32>
    %210 = vector.shape_cast %12 : vector<2x4xf32> to vector<2x1x4xf32>
    tpu.vector_store %arg5[%c0_75, %c0_76, %c0_77], %210 {strides = array<i32>} : memref<2x16x4xf32, #tpu.memory_space<vmem>>, vector<2x1x4xf32>,
    %c0_78 = arith.constant 0 : index
    %c1 = arith.constant 1 : index
    %c0_79 = arith.constant 0 : index
    %211 = vector.load %arg5[%c0_78, %c1, %c0_79] : memref<2x16x4xf32, #tpu.memory_space<vmem>>, vector<2x1x4xf32>
    %212 = vector.shape_cast %211 : vector<2x1x4xf32> to vector<2x4xf32>
    %213 = vector.shape_cast %25 : vector<2x4xf32> to vector<2x1x4xf32>
    tpu.vector_store %arg5[%c0_78, %c1, %c0_79], %213 {strides = array<i32>} : memref<2x16x4xf32, #tpu.memory_space<vmem>>, vector<2x1x4xf32>,
    %c0_80 = arith.constant 0 : index
    %c2 = arith.constant 2 : index
    %c0_81 = arith.constant 0 : index
    %214 = vector.load %arg5[%c0_80, %c2, %c0_81] : memref<2x16x4xf32, #tpu.memory_space<vmem>>, vector<2x1x4xf32>
    %215 = vector.shape_cast %214 : vector<2x1x4xf32> to vector<2x4xf32>
    %216 = vector.shape_cast %38 : vector<2x4xf32> to vector<2x1x4xf32>
    tpu.vector_store %arg5[%c0_80, %c2, %c0_81], %216 {strides = array<i32>} : memref<2x16x4xf32, #tpu.memory_space<vmem>>, vector<2x1x4xf32>,
    %c0_82 = arith.constant 0 : index
    %c3 = arith.constant 3 : index
    %c0_83 = arith.constant 0 : index
    %217 = vector.load %arg5[%c0_82, %c3, %c0_83] : memref<2x16x4xf32, #tpu.memory_space<vmem>>, vector<2x1x4xf32>
    %218 = vector.shape_cast %217 : vector<2x1x4xf32> to vector<2x4xf32>
    %219 = vector.shape_cast %51 : vector<2x4xf32> to vector<2x1x4xf32>
    tpu.vector_store %arg5[%c0_82, %c3, %c0_83], %219 {strides = array<i32>} : memref<2x16x4xf32, #tpu.memory_space<vmem>>, vector<2x1x4xf32>,
    %c0_84 = arith.constant 0 : index
    %c4_85 = arith.constant 4 : index
    %c0_86 = arith.constant 0 : index
    %220 = vector.load %arg5[%c0_84, %c4_85, %c0_86] : memref<2x16x4xf32, #tpu.memory_space<vmem>>, vector<2x1x4xf32>
    %221 = vector.shape_cast %220 : vector<2x1x4xf32> to vector<2x4xf32>
    %222 = vector.shape_cast %64 : vector<2x4xf32> to vector<2x1x4xf32>
    tpu.vector_store %arg5[%c0_84, %c4_85, %c0_86], %222 {strides = array<i32>} : memref<2x16x4xf32, #tpu.memory_space<vmem>>, vector<2x1x4xf32>,
    %c0_87 = arith.constant 0 : index
    %c5 = arith.constant 5 : index
    %c0_88 = arith.constant 0 : index
    %223 = vector.load %arg5[%c0_87, %c5, %c0_88] : memref<2x16x4xf32, #tpu.memory_space<vmem>>, vector<2x1x4xf32>
    %224 = vector.shape_cast %223 : vector<2x1x4xf32> to vector<2x4xf32>
    %225 = vector.shape_cast %77 : vector<2x4xf32> to vector<2x1x4xf32>
    tpu.vector_store %arg5[%c0_87, %c5, %c0_88], %225 {strides = array<i32>} : memref<2x16x4xf32, #tpu.memory_space<vmem>>, vector<2x1x4xf32>,
    %c0_89 = arith.constant 0 : index
    %c6 = arith.constant 6 : index
    %c0_90 = arith.constant 0 : index
    %226 = vector.load %arg5[%c0_89, %c6, %c0_90] : memref<2x16x4xf32, #tpu.memory_space<vmem>>, vector<2x1x4xf32>
    %227 = vector.shape_cast %226 : vector<2x1x4xf32> to vector<2x4xf32>
    %228 = vector.shape_cast %90 : vector<2x4xf32> to vector<2x1x4xf32>
    tpu.vector_store %arg5[%c0_89, %c6, %c0_90], %228 {strides = array<i32>} : memref<2x16x4xf32, #tpu.memory_space<vmem>>, vector<2x1x4xf32>,
    %c0_91 = arith.constant 0 : index
    %c7 = arith.constant 7 : index
    %c0_92 = arith.constant 0 : index
    %229 = vector.load %arg5[%c0_91, %c7, %c0_92] : memref<2x16x4xf32, #tpu.memory_space<vmem>>, vector<2x1x4xf32>
    %230 = vector.shape_cast %229 : vector<2x1x4xf32> to vector<2x4xf32>
    %231 = vector.shape_cast %103 : vector<2x4xf32> to vector<2x1x4xf32>
    tpu.vector_store %arg5[%c0_91, %c7, %c0_92], %231 {strides = array<i32>} : memref<2x16x4xf32, #tpu.memory_space<vmem>>, vector<2x1x4xf32>,
    %c0_93 = arith.constant 0 : index
    %c8_94 = arith.constant 8 : index
    %c0_95 = arith.constant 0 : index
    %232 = vector.load %arg5[%c0_93, %c8_94, %c0_95] : memref<2x16x4xf32, #tpu.memory_space<vmem>>, vector<2x1x4xf32>
    %233 = vector.shape_cast %232 : vector<2x1x4xf32> to vector<2x4xf32>
    %234 = vector.shape_cast %116 : vector<2x4xf32> to vector<2x1x4xf32>
    tpu.vector_store %arg5[%c0_93, %c8_94, %c0_95], %234 {strides = array<i32>} : memref<2x16x4xf32, #tpu.memory_space<vmem>>, vector<2x1x4xf32>,
    %c0_96 = arith.constant 0 : index
    %c9 = arith.constant 9 : index
    %c0_97 = arith.constant 0 : index
    %235 = vector.load %arg5[%c0_96, %c9, %c0_97] : memref<2x16x4xf32, #tpu.memory_space<vmem>>, vector<2x1x4xf32>
    %236 = vector.shape_cast %235 : vector<2x1x4xf32> to vector<2x4xf32>
    %237 = vector.shape_cast %129 : vector<2x4xf32> to vector<2x1x4xf32>
    tpu.vector_store %arg5[%c0_96, %c9, %c0_97], %237 {strides = array<i32>} : memref<2x16x4xf32, #tpu.memory_space<vmem>>, vector<2x1x4xf32>,
    %c0_98 = arith.constant 0 : index
    %c10 = arith.constant 10 : index
    %c0_99 = arith.constant 0 : index
    %238 = vector.load %arg5[%c0_98, %c10, %c0_99] : memref<2x16x4xf32, #tpu.memory_space<vmem>>, vector<2x1x4xf32>
    %239 = vector.shape_cast %238 : vector<2x1x4xf32> to vector<2x4xf32>
    %240 = vector.shape_cast %142 : vector<2x4xf32> to vector<2x1x4xf32>
    tpu.vector_store %arg5[%c0_98, %c10, %c0_99], %240 {strides = array<i32>} : memref<2x16x4xf32, #tpu.memory_space<vmem>>, vector<2x1x4xf32>,
    %c0_100 = arith.constant 0 : index
    %c11 = arith.constant 11 : index
    %c0_101 = arith.constant 0 : index
    %241 = vector.load %arg5[%c0_100, %c11, %c0_101] : memref<2x16x4xf32, #tpu.memory_space<vmem>>, vector<2x1x4xf32>
    %242 = vector.shape_cast %241 : vector<2x1x4xf32> to vector<2x4xf32>
    %243 = vector.shape_cast %155 : vector<2x4xf32> to vector<2x1x4xf32>
    tpu.vector_store %arg5[%c0_100, %c11, %c0_101], %243 {strides = array<i32>} : memref<2x16x4xf32, #tpu.memory_space<vmem>>, vector<2x1x4xf32>,
    %c0_102 = arith.constant 0 : index
    %c12_103 = arith.constant 12 : index
    %c0_104 = arith.constant 0 : index
    %244 = vector.load %arg5[%c0_102, %c12_103, %c0_104] : memref<2x16x4xf32, #tpu.memory_space<vmem>>, vector<2x1x4xf32>
    %245 = vector.shape_cast %244 : vector<2x1x4xf32> to vector<2x4xf32>
    %246 = vector.shape_cast %168 : vector<2x4xf32> to vector<2x1x4xf32>
    tpu.vector_store %arg5[%c0_102, %c12_103, %c0_104], %246 {strides = array<i32>} : memref<2x16x4xf32, #tpu.memory_space<vmem>>, vector<2x1x4xf32>,
    %c0_105 = arith.constant 0 : index
    %c13 = arith.constant 13 : index
    %c0_106 = arith.constant 0 : index
    %247 = vector.load %arg5[%c0_105, %c13, %c0_106] : memref<2x16x4xf32, #tpu.memory_space<vmem>>, vector<2x1x4xf32>
    %248 = vector.shape_cast %247 : vector<2x1x4xf32> to vector<2x4xf32>
    %249 = vector.shape_cast %181 : vector<2x4xf32> to vector<2x1x4xf32>
    tpu.vector_store %arg5[%c0_105, %c13, %c0_106], %249 {strides = array<i32>} : memref<2x16x4xf32, #tpu.memory_space<vmem>>, vector<2x1x4xf32>,
    %c0_107 = arith.constant 0 : index
    %c14 = arith.constant 14 : index
    %c0_108 = arith.constant 0 : index
    %250 = vector.load %arg5[%c0_107, %c14, %c0_108] : memref<2x16x4xf32, #tpu.memory_space<vmem>>, vector<2x1x4xf32>
    %251 = vector.shape_cast %250 : vector<2x1x4xf32> to vector<2x4xf32>
    %252 = vector.shape_cast %194 : vector<2x4xf32> to vector<2x1x4xf32>
    tpu.vector_store %arg5[%c0_107, %c14, %c0_108], %252 {strides = array<i32>} : memref<2x16x4xf32, #tpu.memory_space<vmem>>, vector<2x1x4xf32>,
    %c0_109 = arith.constant 0 : index
    %c15 = arith.constant 15 : index
    %c0_110 = arith.constant 0 : index
    %253 = vector.load %arg5[%c0_109, %c15, %c0_110] : memref<2x16x4xf32, #tpu.memory_space<vmem>>, vector<2x1x4xf32>
    %254 = vector.shape_cast %253 : vector<2x1x4xf32> to vector<2x4xf32>
    %255 = vector.shape_cast %207 : vector<2x4xf32> to vector<2x1x4xf32>
    tpu.vector_store %arg5[%c0_109, %c15, %c0_110], %255 {strides = array<i32>} : memref<2x16x4xf32, #tpu.memory_space<vmem>>, vector<2x1x4xf32>,
    %256 = arith.maximumf %12, %25 : vector<2x4xf32>
    %257 = arith.maximumf %256, %64 : vector<2x4xf32>
    %258 = arith.maximumf %257, %77 : vector<2x4xf32>
    %259 = arith.maximumf %38, %51 : vector<2x4xf32>
    %260 = arith.maximumf %259, %90 : vector<2x4xf32>
    %261 = arith.maximumf %260, %103 : vector<2x4xf32>
    %262 = arith.maximumf %116, %129 : vector<2x4xf32>
    %263 = arith.maximumf %262, %168 : vector<2x4xf32>
    %264 = arith.maximumf %263, %181 : vector<2x4xf32>
    %265 = arith.maximumf %142, %155 : vector<2x4xf32>
    %266 = arith.maximumf %265, %194 : vector<2x4xf32>
    %267 = arith.maximumf %266, %207 : vector<2x4xf32>
    %c0_111 = arith.constant 0 : index
    %c0_112 = arith.constant 0 : index
    %c0_113 = arith.constant 0 : index
    %268 = vector.load %arg4[%c0_111, %c0_112, %c0_113] : memref<2x4x4xf32, #tpu.memory_space<vmem>>, vector<2x1x4xf32>
    %269 = vector.shape_cast %268 : vector<2x1x4xf32> to vector<2x4xf32>
    %270 = vector.shape_cast %258 : vector<2x4xf32> to vector<2x1x4xf32>
    tpu.vector_store %arg4[%c0_111, %c0_112, %c0_113], %270 {strides = array<i32>} : memref<2x4x4xf32, #tpu.memory_space<vmem>>, vector<2x1x4xf32>,
    %c0_114 = arith.constant 0 : index
    %c1_115 = arith.constant 1 : index
    %c0_116 = arith.constant 0 : index
    %271 = vector.load %arg4[%c0_114, %c1_115, %c0_116] : memref<2x4x4xf32, #tpu.memory_space<vmem>>, vector<2x1x4xf32>
    %272 = vector.shape_cast %271 : vector<2x1x4xf32> to vector<2x4xf32>
    %273 = vector.shape_cast %261 : vector<2x4xf32> to vector<2x1x4xf32>
    tpu.vector_store %arg4[%c0_114, %c1_115, %c0_116], %273 {strides = array<i32>} : memref<2x4x4xf32, #tpu.memory_space<vmem>>, vector<2x1x4xf32>,
    %c0_117 = arith.constant 0 : index
    %c2_118 = arith.constant 2 : index
    %c0_119 = arith.constant 0 : index
    %274 = vector.load %arg4[%c0_117, %c2_118, %c0_119] : memref<2x4x4xf32, #tpu.memory_space<vmem>>, vector<2x1x4xf32>
    %275 = vector.shape_cast %274 : vector<2x1x4xf32> to vector<2x4xf32>
    %276 = vector.shape_cast %264 : vector<2x4xf32> to vector<2x1x4xf32>
    tpu.vector_store %arg4[%c0_117, %c2_118, %c0_119], %276 {strides = array<i32>} : memref<2x4x4xf32, #tpu.memory_space<vmem>>, vector<2x1x4xf32>,
    %c0_120 = arith.constant 0 : index
    %c3_121 = arith.constant 3 : index
    %c0_122 = arith.constant 0 : index
    %277 = vector.load %arg4[%c0_120, %c3_121, %c0_122] : memref<2x4x4xf32, #tpu.memory_space<vmem>>, vector<2x1x4xf32>
    %278 = vector.shape_cast %277 : vector<2x1x4xf32> to vector<2x4xf32>
    %279 = vector.shape_cast %267 : vector<2x4xf32> to vector<2x1x4xf32>
    tpu.vector_store %arg4[%c0_120, %c3_121, %c0_122], %279 {strides = array<i32>} : memref<2x4x4xf32, #tpu.memory_space<vmem>>, vector<2x1x4xf32>,
    %280 = arith.maximumf %258, %261 : vector<2x4xf32>
    %281 = arith.maximumf %280, %264 : vector<2x4xf32>
    %282 = arith.maximumf %281, %267 : vector<2x4xf32>
    %c0_123 = arith.constant 0 : index
    %c0_124 = arith.constant 0 : index
    %c0_125 = arith.constant 0 : index
    %283 = vector.load %arg3[%c0_123, %c0_124, %c0_125] : memref<2x1x4xf32, #tpu.memory_space<vmem>>, vector<2x1x4xf32>
    %284 = vector.shape_cast %283 : vector<2x1x4xf32> to vector<2x4xf32>
    %285 = vector.shape_cast %282 : vector<2x4xf32> to vector<2x1x4xf32>
    tpu.vector_store %arg3[%c0_123, %c0_124, %c0_125], %285 {strides = array<i32>} : memref<2x1x4xf32, #tpu.memory_space<vmem>>, vector<2x1x4xf32>,
    return
  }
  func.func @transform_0(%arg0: i32, %arg1: i32) -> (i32, i32, i32, i32) {
    %c0_i32 = arith.constant 0 : i32
    %c0_i32_0 = arith.constant 0 : i32
    %c0_i32_1 = arith.constant 0 : i32
    return %arg0, %c0_i32, %c0_i32_0, %arg1 : i32, i32, i32, i32
  }
  func.func @transform_1(%arg0: i32, %arg1: i32) -> (i32, i32, i32) {
    %c0_i32 = arith.constant 0 : i32
    %c0_i32_0 = arith.constant 0 : i32
    return %arg0, %c0_i32, %arg1 : i32, i32, i32
  }
  func.func @transform_2(%arg0: i32, %arg1: i32) -> (i32, i32, i32) {
    %c0_i32 = arith.constant 0 : i32
    %c0_i32_0 = arith.constant 0 : i32
    return %arg0, %c0_i32, %arg1 : i32, i32, i32
  }
  func.func @transform_3(%arg0: i32, %arg1: i32) -> (i32, i32, i32) {
    %c0_i32 = arith.constant 0 : i32
    %c0_i32_0 = arith.constant 0 : i32
    return %arg0, %c0_i32, %arg1 : i32, i32, i32
  }
}

</mosaic_0001>

<llo_original>
// kernel: tpu_custom_call.1
$region0: #{tpu_custom_call.1}
  #allocation0 [shape = 'u32[]', space=smem, size = 0x4, offset = 0x4, fixed_abs, tag = 'smem constant byte address 0x4 - core index']
  #allocation1 [shape = 'u32[144,128]{1,0:T(1,128)}', space=vmem, size = 0x12000, scoped, tag = 'internal scratch']
  %s0 = inlined_call_operand.vmem [shape: f32[2,16,16,4], index: 0, kind: input, shape index: {}]
  %s1 = inlined_call_operand.hbm [shape: f32[2,1,4], index: 1, kind: output, shape index: {0}]
  %s2 = inlined_call_operand.hbm [shape: f32[2,4,4], index: 2, kind: output, shape index: {1}]
  %s3 = inlined_call_operand.vmem [shape: f32[2,16,4], index: 3, kind: output, shape index: {2}]
  %4 = xla_tuple %s1, %s2, %s3
  %s5 = sld [smem:[#allocation0]]
  $region30: #{tpu_custom_call.1} parent=0
    _
  %s7 = ssub.s32 1, %s5
  %s8 = scalar_select 0, %s7, %s5
  $region1: #{tpu_custom_call.1} parent=0
    #allocation2 [shape = 'u8[1024]{0}', space=vmem, size = 0x400, scoped, tag = 'output window, operand 0, single buffered']
    #allocation3 [shape = 's32[1]{0}', space=sflag, size = 0x4, scoped, tag = 'scoped memory for tpu_custom_call.1']
    #allocation4 [shape = 'u8[4096]{0}', space=vmem, size = 0x1000, scoped, tag = 'output window, operand 1, single buffered']
    #allocation5 [shape = 's32[1]{0}', space=sflag, size = 0x4, scoped, tag = 'scoped memory for tpu_custom_call.1']
    %9 = vsyncpa [#allocation3], 0
    %10 = vsyncpa [#allocation5], 0
    // Predicated region
    $region2: #{tpu_custom_call.1} parent=1 // pred_check
      _
    $region3: #{tpu_custom_call.1} parent=1 // pred_check_branch
      %12 = sbr.rel (0) target = $region5
    $region4: #{tpu_custom_call.1} parent=1 // pred_region
      _
    $region5: #{tpu_custom_call.1} parent=1 // pred_fallthru
      _
    %v13 = vld [vmem:[%s0] sm:$0xf]
    %v14 = vld [vmem:[%s0 + $0x10] sm:$0xf]
    %v15 = vld [vmem:[%s0 + $0x20] sm:$0xf]
    %v16 = vld [vmem:[%s0 + $0x30] sm:$0xf]
    %v17 = vld [vmem:[%s0 + $0x100] sm:$0xf]
    %v18 = vld [vmem:[%s0 + $0x110] sm:$0xf]
    %v19 = vld [vmem:[%s0 + $0x120] sm:$0xf]
    %v20 = vld [vmem:[%s0 + $0x130] sm:$0xf]
    %v21 = vmax.f32 %v13, %v14
    %v22 = vmax.f32 %v17, %v18
    %v23 = vmax.f32 %v21, %v15
    %v24 = vmax.f32 %v22, %v19
    %v25 = vmax.f32 %v23, %v16
    %v26 = vmax.f32 %v24, %v20
    %vm27 = vcmask 27648
    %v28 = vsel %vm27, %v25, -inf
    %v29 = vrot.slane %v28, 4
    %v30 = vmax.f32 %v28, %v29
    %v31 = vrot.slane %v30, 2
    %v32 = vmax.f32 %v30, %v31
    %v33 = vrot.slane %v32, 1
    %v34 = vmax.f32 %v32, %v33
    %v35 = vsel %vm27, %v26, -inf
    %v36 = vrot.slane %v35, 4
    %v37 = vmax.f32 %v35, %v36
    %v38 = vrot.slane %v37, 2
    %v39 = vmax.f32 %v37, %v38
    %v40 = vrot.slane %v39, 1
    %v41 = vmax.f32 %v39, %v40
    %v42 = vld [vmem:[%s0 + $0x4] sm:$0xf]
    %v43 = vld [vmem:[%s0 + $0x14] sm:$0xf]
    %v44 = vld [vmem:[%s0 + $0x24] sm:$0xf]
    %v45 = vld [vmem:[%s0 + $0x34] sm:$0xf]
    %v46 = vld [vmem:[%s0 + $0x104] sm:$0xf]
    %v47 = vld [vmem:[%s0 + $0x114] sm:$0xf]
    %v48 = vld [vmem:[%s0 + $0x124] sm:$0xf]
    %v49 = vld [vmem:[%s0 + $0x134] sm:$0xf]
    %v50 = vmax.f32 %v42, %v43
    %v51 = vmax.f32 %v46, %v47
    %v52 = vmax.f32 %v50, %v44
    %v53 = vmax.f32 %v51, %v48
    %v54 = vmax.f32 %v52, %v45
    %v55 = vmax.f32 %v53, %v49
    %v56 = vsel %vm27, %v54, -inf
    %v57 = vrot.slane %v56, 4
    %v58 = vmax.f32 %v56, %v57
    %v59 = vrot.slane %v58, 2
    %v60 = vmax.f32 %v58, %v59
    %v61 = vrot.slane %v60, 1
    %v62 = vmax.f32 %v60, %v61
    %v63 = vsel %vm27, %v55, -inf
    %v64 = vrot.slane %v63, 4
    %v65 = vmax.f32 %v63, %v64
    %v66 = vrot.slane %v65, 2
    %v67 = vmax.f32 %v65, %v66
    %v68 = vrot.slane %v67, 1
    %v69 = vmax.f32 %v67, %v68
    %v70 = vld [vmem:[%s0 + $0x8] sm:$0xf]
    %v71 = vld [vmem:[%s0 + $0x18] sm:$0xf]
    %v72 = vld [vmem:[%s0 + $0x28] sm:$0xf]
    %v73 = vld [vmem:[%s0 + $0x38] sm:$0xf]
    %v74 = vld [vmem:[%s0 + $0x108] sm:$0xf]
    %v75 = vld [vmem:[%s0 + $0x118] sm:$0xf]
    %v76 = vld [vmem:[%s0 + $0x128] sm:$0xf]
    %v77 = vld [vmem:[%s0 + $0x138] sm:$0xf]
    %v78 = vmax.f32 %v70, %v71
    %v79 = vmax.f32 %v74, %v75
    %v80 = vmax.f32 %v78, %v72
    %v81 = vmax.f32 %v79, %v76
    %v82 = vmax.f32 %v80, %v73
    %v83 = vmax.f32 %v81, %v77
    %v84 = vsel %vm27, %v82, -inf
    %v85 = vrot.slane %v84, 4
    %v86 = vmax.f32 %v84, %v85
    %v87 = vrot.slane %v86, 2
    %v88 = vmax.f32 %v86, %v87
    %v89 = vrot.slane %v88, 1
    %v90 = vmax.f32 %v88, %v89
    %v91 = vsel %vm27, %v83, -inf
    %v92 = vrot.slane %v91, 4
    %v93 = vmax.f32 %v91, %v92
    %v94 = vrot.slane %v93, 2
    %v95 = vmax.f32 %v93, %v94
    %v96 = vrot.slane %v95, 1
    %v97 = vmax.f32 %v95, %v96
    %v98 = vld [vmem:[%s0 + $0xc] sm:$0xf]
    %v99 = vld [vmem:[%s0 + $0x1c] sm:$0xf]
    %v100 = vld [vmem:[%s0 + $0x2c] sm:$0xf]
    %v101 = vld [vmem:[%s0 + $0x3c] sm:$0xf]
    %v102 = vld [vmem:[%s0 + $0x10c] sm:$0xf]
    %v103 = vld [vmem:[%s0 + $0x11c] sm:$0xf]
    %v104 = vld [vmem:[%s0 + $0x12c] sm:$0xf]
    %v105 = vld [vmem:[%s0 + $0x13c] sm:$0xf]
    %v106 = vmax.f32 %v98, %v99
    %v107 = vmax.f32 %v102, %v103
    %v108 = vmax.f32 %v106, %v100
    %v109 = vmax.f32 %v107, %v104
    %v110 = vmax.f32 %v108, %v101
    %v111 = vmax.f32 %v109, %v105
    %v112 = vsel %vm27, %v110, -inf
    %v113 = vrot.slane %v112, 4
    %v114 = vmax.f32 %v112, %v113
    %v115 = vrot.slane %v114, 2
    %v116 = vmax.f32 %v114, %v115
    %v117 = vrot.slane %v116, 1
    %v118 = vmax.f32 %v116, %v117
    %v119 = vsel %vm27, %v111, -inf
    %v120 = vrot.slane %v119, 4
    %v121 = vmax.f32 %v119, %v120
    %v122 = vrot.slane %v121, 2
    %v123 = vmax.f32 %v121, %v122
    %v124 = vrot.slane %v123, 1
    %v125 = vmax.f32 %v123, %v124
    %s126 = scalar_lea.vmem %s0, 64
    %v127 = vld [vmem:[%s126] sm:$0xf]
    %v128 = vld [vmem:[%s126 + $0x10] sm:$0xf]
    %v129 = vld [vmem:[%s126 + $0x20] sm:$0xf]
    %v130 = vld [vmem:[%s126 + $0x30] sm:$0xf]
    %v131 = vld [vmem:[%s126 + $0x100] sm:$0xf]
    %v132 = vld [vmem:[%s126 + $0x110] sm:$0xf]
    %v133 = vld [vmem:[%s126 + $0x120] sm:$0xf]
    %v134 = vld [vmem:[%s126 + $0x130] sm:$0xf]
    %v135 = vmax.f32 %v127, %v128
    %v136 = vmax.f32 %v131, %v132
    %v137 = vmax.f32 %v135, %v129
    %v138 = vmax.f32 %v136, %v133
    %v139 = vmax.f32 %v137, %v130
    %v140 = vmax.f32 %v138, %v134
    %v141 = vsel %vm27, %v139, -inf
    %v142 = vrot.slane %v141, 4
    %v143 = vmax.f32 %v141, %v142
    %v144 = vrot.slane %v143, 2
    %v145 = vmax.f32 %v143, %v144
    %v146 = vrot.slane %v145, 1
    %v147 = vmax.f32 %v145, %v146
    %v148 = vsel %vm27, %v140, -inf
    %v149 = vrot.slane %v148, 4
    %v150 = vmax.f32 %v148, %v149
    %v151 = vrot.slane %v150, 2
    %v152 = vmax.f32 %v150, %v151
    %v153 = vrot.slane %v152, 1
    %v154 = vmax.f32 %v152, %v153
    %v155 = vld [vmem:[%s126 + $0x4] sm:$0xf]
    %v156 = vld [vmem:[%s126 + $0x14] sm:$0xf]
    %v157 = vld [vmem:[%s126 + $0x24] sm:$0xf]
    %v158 = vld [vmem:[%s126 + $0x34] sm:$0xf]
    %v159 = vld [vmem:[%s126 + $0x104] sm:$0xf]
    %v160 = vld [vmem:[%s126 + $0x114] sm:$0xf]
    %v161 = vld [vmem:[%s126 + $0x124] sm:$0xf]
    %v162 = vld [vmem:[%s126 + $0x134] sm:$0xf]
    %v163 = vmax.f32 %v155, %v156
    %v164 = vmax.f32 %v159, %v160
    %v165 = vmax.f32 %v163, %v157
    %v166 = vmax.f32 %v164, %v161
    %v167 = vmax.f32 %v165, %v158
    %v168 = vmax.f32 %v166, %v162
    %v169 = vsel %vm27, %v167, -inf
    %v170 = vrot.slane %v169, 4
    %v171 = vmax.f32 %v169, %v170
    %v172 = vrot.slane %v171, 2
    %v173 = vmax.f32 %v171, %v172
    %v174 = vrot.slane %v173, 1
    %v175 = vmax.f32 %v173, %v174
    %v176 = vsel %vm27, %v168, -inf
    %v177 = vrot.slane %v176, 4
    %v178 = vmax.f32 %v176, %v177
    %v179 = vrot.slane %v178, 2
    %v180 = vmax.f32 %v178, %v179
    %v181 = vrot.slane %v180, 1
    %v182 = vmax.f32 %v180, %v181
    %v183 = vld [vmem:[%s126 + $0x8] sm:$0xf]
    %v184 = vld [vmem:[%s126 + $0x18] sm:$0xf]
    %v185 = vld [vmem:[%s126 + $0x28] sm:$0xf]
    %v186 = vld [vmem:[%s126 + $0x38] sm:$0xf]
    %v187 = vld [vmem:[%s126 + $0x108] sm:$0xf]
    %v188 = vld [vmem:[%s126 + $0x118] sm:$0xf]
    %v189 = vld [vmem:[%s126 + $0x128] sm:$0xf]
    %v190 = vld [vmem:[%s126 + $0x138] sm:$0xf]
    %v191 = vmax.f32 %v183, %v184
    %v192 = vmax.f32 %v187, %v188
    %v193 = vmax.f32 %v191, %v185
    %v194 = vmax.f32 %v192, %v189
    %v195 = vmax.f32 %v193, %v186
    %v196 = vmax.f32 %v194, %v190
    %v197 = vsel %vm27, %v195, -inf
    %v198 = vrot.slane %v197, 4
    %v199 = vmax.f32 %v197, %v198
    %v200 = vrot.slane %v199, 2
    %v201 = vmax.f32 %v199, %v200
    %v202 = vrot.slane %v201, 1
    %v203 = vmax.f32 %v201, %v202
    %v204 = vsel %vm27, %v196, -inf
    %v205 = vrot.slane %v204, 4
    %v206 = vmax.f32 %v204, %v205
    %v207 = vrot.slane %v206, 2
    %v208 = vmax.f32 %v206, %v207
    %v209 = vrot.slane %v208, 1
    %v210 = vmax.f32 %v208, %v209
    %v211 = vld [vmem:[%s126 + $0xc] sm:$0xf]
    %v212 = vld [vmem:[%s126 + $0x1c] sm:$0xf]
    %v213 = vld [vmem:[%s126 + $0x2c] sm:$0xf]
    %v214 = vld [vmem:[%s126 + $0x3c] sm:$0xf]
    %v215 = vld [vmem:[%s126 + $0x10c] sm:$0xf]
    %v216 = vld [vmem:[%s126 + $0x11c] sm:$0xf]
    %v217 = vld [vmem:[%s126 + $0x12c] sm:$0xf]
    %v218 = vld [vmem:[%s126 + $0x13c] sm:$0xf]
    %v219 = vmax.f32 %v211, %v212
    %v220 = vmax.f32 %v215, %v216
    %v221 = vmax.f32 %v219, %v213
    %v222 = vmax.f32 %v220, %v217
    %v223 = vmax.f32 %v221, %v214
    %v224 = vmax.f32 %v222, %v218
    %v225 = vsel %vm27, %v223, -inf
    %v226 = vrot.slane %v225, 4
    %v227 = vmax.f32 %v225, %v226
    %v228 = vrot.slane %v227, 2
    %v229 = vmax.f32 %v227, %v228
    %v230 = vrot.slane %v229, 1
    %v231 = vmax.f32 %v229, %v230
    %v232 = vsel %vm27, %v224, -inf
    %v233 = vrot.slane %v232, 4
    %v234 = vmax.f32 %v232, %v233
    %v235 = vrot.slane %v234, 2
    %v236 = vmax.f32 %v234, %v235
    %v237 = vrot.slane %v236, 1
    %v238 = vmax.f32 %v236, %v237
    %s239 = scalar_lea.vmem %s0, 128
    %v240 = vld [vmem:[%s239] sm:$0xf]
    %v241 = vld [vmem:[%s239 + $0x10] sm:$0xf]
    %v242 = vld [vmem:[%s239 + $0x20] sm:$0xf]
    %v243 = vld [vmem:[%s239 + $0x30] sm:$0xf]
    %v244 = vld [vmem:[%s239 + $0x100] sm:$0xf]
    %v245 = vld [vmem:[%s239 + $0x110] sm:$0xf]
    %v246 = vld [vmem:[%s239 + $0x120] sm:$0xf]
    %v247 = vld [vmem:[%s239 + $0x130] sm:$0xf]
    %v248 = vmax.f32 %v240, %v241
    %v249 = vmax.f32 %v244, %v245
    %v250 = vmax.f32 %v248, %v242
    %v251 = vmax.f32 %v249, %v246
    %v252 = vmax.f32 %v250, %v243
    %v253 = vmax.f32 %v251, %v247
    %v254 = vsel %vm27, %v252, -inf
    %v255 = vrot.slane %v254, 4
    %v256 = vmax.f32 %v254, %v255
    %v257 = vrot.slane %v256, 2
    %v258 = vmax.f32 %v256, %v257
    %v259 = vrot.slane %v258, 1
    %v260 = vmax.f32 %v258, %v259
    %v261 = vsel %vm27, %v253, -inf
    %v262 = vrot.slane %v261, 4
    %v263 = vmax.f32 %v261, %v262
    %v264 = vrot.slane %v263, 2
    %v265 = vmax.f32 %v263, %v264
    %v266 = vrot.slane %v265, 1
    %v267 = vmax.f32 %v265, %v266
    %v268 = vld [vmem:[%s239 + $0x4] sm:$0xf]
    %v269 = vld [vmem:[%s239 + $0x14] sm:$0xf]
    %v270 = vld [vmem:[%s239 + $0x24] sm:$0xf]
    %v271 = vld [vmem:[%s239 + $0x34] sm:$0xf]
    %v272 = vld [vmem:[%s239 + $0x104] sm:$0xf]
    %v273 = vld [vmem:[%s239 + $0x114] sm:$0xf]
    %v274 = vld [vmem:[%s239 + $0x124] sm:$0xf]
    %v275 = vld [vmem:[%s239 + $0x134] sm:$0xf]
    %v276 = vmax.f32 %v268, %v269
    %v277 = vmax.f32 %v272, %v273
    %v278 = vmax.f32 %v276, %v270
    %v279 = vmax.f32 %v277, %v274
    %v280 = vmax.f32 %v278, %v271
    %v281 = vmax.f32 %v279, %v275
    %v282 = vsel %vm27, %v280, -inf
    %v283 = vrot.slane %v282, 4
    %v284 = vmax.f32 %v282, %v283
    %v285 = vrot.slane %v284, 2
    %v286 = vmax.f32 %v284, %v285
    %v287 = vrot.slane %v286, 1
    %v288 = vmax.f32 %v286, %v287
    %v289 = vsel %vm27, %v281, -inf
    %v290 = vrot.slane %v289, 4
    %v291 = vmax.f32 %v289, %v290
    %v292 = vrot.slane %v291, 2
    %v293 = vmax.f32 %v291, %v292
    %v294 = vrot.slane %v293, 1
    %v295 = vmax.f32 %v293, %v294
    %v296 = vld [vmem:[%s239 + $0x8] sm:$0xf]
    %v297 = vld [vmem:[%s239 + $0x18] sm:$0xf]
    %v298 = vld [vmem:[%s239 + $0x28] sm:$0xf]
    %v299 = vld [vmem:[%s239 + $0x38] sm:$0xf]
    %v300 = vld [vmem:[%s239 + $0x108] sm:$0xf]
    %v301 = vld [vmem:[%s239 + $0x118] sm:$0xf]
    %v302 = vld [vmem:[%s239 + $0x128] sm:$0xf]
    %v303 = vld [vmem:[%s239 + $0x138] sm:$0xf]
    %v304 = vmax.f32 %v296, %v297
    %v305 = vmax.f32 %v300, %v301
    %v306 = vmax.f32 %v304, %v298
    %v307 = vmax.f32 %v305, %v302
    %v308 = vmax.f32 %v306, %v299
    %v309 = vmax.f32 %v307, %v303
    %v310 = vsel %vm27, %v308, -inf
    %v311 = vrot.slane %v310, 4
    %v312 = vmax.f32 %v310, %v311
    %v313 = vrot.slane %v312, 2
    %v314 = vmax.f32 %v312, %v313
    %v315 = vrot.slane %v314, 1
    %v316 = vmax.f32 %v314, %v315
    %v317 = vsel %vm27, %v309, -inf
    %v318 = vrot.slane %v317, 4
    %v319 = vmax.f32 %v317, %v318
    %v320 = vrot.slane %v319, 2
    %v321 = vmax.f32 %v319, %v320
    %v322 = vrot.slane %v321, 1
    %v323 = vmax.f32 %v321, %v322
    %v324 = vld [vmem:[%s239 + $0xc] sm:$0xf]
    %v325 = vld [vmem:[%s239 + $0x1c] sm:$0xf]
    %v326 = vld [vmem:[%s239 + $0x2c] sm:$0xf]
    %v327 = vld [vmem:[%s239 + $0x3c] sm:$0xf]
    %v328 = vld [vmem:[%s239 + $0x10c] sm:$0xf]
    %v329 = vld [vmem:[%s239 + $0x11c] sm:$0xf]
    %v330 = vld [vmem:[%s239 + $0x12c] sm:$0xf]
    %v331 = vld [vmem:[%s239 + $0x13c] sm:$0xf]
    %v332 = vmax.f32 %v324, %v325
    %v333 = vmax.f32 %v328, %v329
    %v334 = vmax.f32 %v332, %v326
    %v335 = vmax.f32 %v333, %v330
    %v336 = vmax.f32 %v334, %v327
    %v337 = vmax.f32 %v335, %v331
    %v338 = vsel %vm27, %v336, -inf
    %v339 = vrot.slane %v338, 4
    %v340 = vmax.f32 %v338, %v339
    %v341 = vrot.slane %v340, 2
    %v342 = vmax.f32 %v340, %v341
    %v343 = vrot.slane %v342, 1
    %v344 = vmax.f32 %v342, %v343
    %v345 = vsel %vm27, %v337, -inf
    %v346 = vrot.slane %v345, 4
    %v347 = vmax.f32 %v345, %v346
    %v348 = vrot.slane %v347, 2
    %v349 = vmax.f32 %v347, %v348
    %v350 = vrot.slane %v349, 1
    %v351 = vmax.f32 %v349, %v350
    %s352 = scalar_lea.vmem %s0, 192
    %v353 = vld [vmem:[%s352] sm:$0xf]
    %v354 = vld [vmem:[%s352 + $0x10] sm:$0xf]
    %v355 = vld [vmem:[%s352 + $0x20] sm:$0xf]
    %v356 = vld [vmem:[%s352 + $0x30] sm:$0xf]
    %v357 = vld [vmem:[%s352 + $0x100] sm:$0xf]
    %v358 = vld [vmem:[%s352 + $0x110] sm:$0xf]
    %v359 = vld [vmem:[%s352 + $0x120] sm:$0xf]
    %v360 = vld [vmem:[%s352 + $0x130] sm:$0xf]
    %v361 = vmax.f32 %v353, %v354
    %v362 = vmax.f32 %v357, %v358
    %v363 = vmax.f32 %v361, %v355
    %v364 = vmax.f32 %v362, %v359
    %v365 = vmax.f32 %v363, %v356
    %v366 = vmax.f32 %v364, %v360
    %v367 = vsel %vm27, %v365, -inf
    %v368 = vrot.slane %v367, 4
    %v369 = vmax.f32 %v367, %v368
    %v370 = vrot.slane %v369, 2
    %v371 = vmax.f32 %v369, %v370
    %v372 = vrot.slane %v371, 1
    %v373 = vmax.f32 %v371, %v372
    %v374 = vsel %vm27, %v366, -inf
    %v375 = vrot.slane %v374, 4
    %v376 = vmax.f32 %v374, %v375
    %v377 = vrot.slane %v376, 2
    %v378 = vmax.f32 %v376, %v377
    %v379 = vrot.slane %v378, 1
    %v380 = vmax.f32 %v378, %v379
    %v381 = vld [vmem:[%s352 + $0x4] sm:$0xf]
    %v382 = vld [vmem:[%s352 + $0x14] sm:$0xf]
    %v383 = vld [vmem:[%s352 + $0x24] sm:$0xf]
    %v384 = vld [vmem:[%s352 + $0x34] sm:$0xf]
    %v385 = vld [vmem:[%s352 + $0x104] sm:$0xf]
    %v386 = vld [vmem:[%s352 + $0x114] sm:$0xf]
    %v387 = vld [vmem:[%s352 + $0x124] sm:$0xf]
    %v388 = vld [vmem:[%s352 + $0x134] sm:$0xf]
    %v389 = vmax.f32 %v381, %v382
    %v390 = vmax.f32 %v385, %v386
    %v391 = vmax.f32 %v389, %v383
    %v392 = vmax.f32 %v390, %v387
    %v393 = vmax.f32 %v391, %v384
    %v394 = vmax.f32 %v392, %v388
    %v395 = vsel %vm27, %v393, -inf
    %v396 = vrot.slane %v395, 4
    %v397 = vmax.f32 %v395, %v396
    %v398 = vrot.slane %v397, 2
    %v399 = vmax.f32 %v397, %v398
    %v400 = vrot.slane %v399, 1
    %v401 = vmax.f32 %v399, %v400
    %v402 = vsel %vm27, %v394, -inf
    %v403 = vrot.slane %v402, 4
    %v404 = vmax.f32 %v402, %v403
    %v405 = vrot.slane %v404, 2
    %v406 = vmax.f32 %v404, %v405
    %v407 = vrot.slane %v406, 1
    %v408 = vmax.f32 %v406, %v407
    %v409 = vld [vmem:[%s352 + $0x8] sm:$0xf]
    %v410 = vld [vmem:[%s352 + $0x18] sm:$0xf]
    %v411 = vld [vmem:[%s352 + $0x28] sm:$0xf]
    %v412 = vld [vmem:[%s352 + $0x38] sm:$0xf]
    %v413 = vld [vmem:[%s352 + $0x108] sm:$0xf]
    %v414 = vld [vmem:[%s352 + $0x118] sm:$0xf]
    %v415 = vld [vmem:[%s352 + $0x128] sm:$0xf]
    %v416 = vld [vmem:[%s352 + $0x138] sm:$0xf]
    %v417 = vmax.f32 %v409, %v410
    %v418 = vmax.f32 %v413, %v414
    %v419 = vmax.f32 %v417, %v411
    %v420 = vmax.f32 %v418, %v415
    %v421 = vmax.f32 %v419, %v412
    %v422 = vmax.f32 %v420, %v416
    %v423 = vsel %vm27, %v421, -inf
    %v424 = vrot.slane %v423, 4
    %v425 = vmax.f32 %v423, %v424
    %v426 = vrot.slane %v425, 2
    %v427 = vmax.f32 %v425, %v426
    %v428 = vrot.slane %v427, 1
    %v429 = vmax.f32 %v427, %v428
    %v430 = vsel %vm27, %v422, -inf
    %v431 = vrot.slane %v430, 4
    %v432 = vmax.f32 %v430, %v431
    %v433 = vrot.slane %v432, 2
    %v434 = vmax.f32 %v432, %v433
    %v435 = vrot.slane %v434, 1
    %v436 = vmax.f32 %v434, %v435
    %v437 = vld [vmem:[%s352 + $0xc] sm:$0xf]
    %v438 = vld [vmem:[%s352 + $0x1c] sm:$0xf]
    %v439 = vld [vmem:[%s352 + $0x2c] sm:$0xf]
    %v440 = vld [vmem:[%s352 + $0x3c] sm:$0xf]
    %v441 = vld [vmem:[%s352 + $0x10c] sm:$0xf]
    %v442 = vld [vmem:[%s352 + $0x11c] sm:$0xf]
    %v443 = vld [vmem:[%s352 + $0x12c] sm:$0xf]
    %v444 = vld [vmem:[%s352 + $0x13c] sm:$0xf]
    %v445 = vmax.f32 %v437, %v438
    %v446 = vmax.f32 %v441, %v442
    %v447 = vmax.f32 %v445, %v439
    %v448 = vmax.f32 %v446, %v443
    %v449 = vmax.f32 %v447, %v440
    %v450 = vmax.f32 %v448, %v444
    %v451 = vsel %vm27, %v449, -inf
    %v452 = vrot.slane %v451, 4
    %v453 = vmax.f32 %v451, %v452
    %v454 = vrot.slane %v453, 2
    %v455 = vmax.f32 %v453, %v454
    %v456 = vrot.slane %v455, 1
    %v457 = vmax.f32 %v455, %v456
    %v458 = vsel %vm27, %v450, -inf
    %v459 = vrot.slane %v458, 4
    %v460 = vmax.f32 %v458, %v459
    %v461 = vrot.slane %v460, 2
    %v462 = vmax.f32 %v460, %v461
    %v463 = vrot.slane %v462, 1
    %v464 = vmax.f32 %v462, %v463
    %vm465 = vcmask 24576
    %466 = vst.msk [vmem:[%s3] sm:$0x1] %vm465, %v34
    %467 = vst.msk [vmem:[%s3 + $0x10] sm:$0x1] %vm465, %v41
    %468 = vst.msk [vmem:[%s3 + $0x1] sm:$0x1] %vm465, %v62
    %469 = vst.msk [vmem:[%s3 + $0x11] sm:$0x1] %vm465, %v69
    %470 = vst.msk [vmem:[%s3 + $0x2] sm:$0x1] %vm465, %v90
    %471 = vst.msk [vmem:[%s3 + $0x12] sm:$0x1] %vm465, %v97
    %472 = vst.msk [vmem:[%s3 + $0x3] sm:$0x1] %vm465, %v118
    %473 = vst.msk [vmem:[%s3 + $0x13] sm:$0x1] %vm465, %v125
    %474 = vst.msk [vmem:[%s3 + $0x4] sm:$0x1] %vm465, %v147
    %475 = vst.msk [vmem:[%s3 + $0x14] sm:$0x1] %vm465, %v154
    %476 = vst.msk [vmem:[%s3 + $0x5] sm:$0x1] %vm465, %v175
    %477 = vst.msk [vmem:[%s3 + $0x15] sm:$0x1] %vm465, %v182
    %478 = vst.msk [vmem:[%s3 + $0x6] sm:$0x1] %vm465, %v203
    %479 = vst.msk [vmem:[%s3 + $0x16] sm:$0x1] %vm465, %v210
    %480 = vst.msk [vmem:[%s3 + $0x7] sm:$0x1] %vm465, %v231
    %481 = vst.msk [vmem:[%s3 + $0x17] sm:$0x1] %vm465, %v238
    %482 = vst.msk [vmem:[%s3 + $0x8] sm:$0x1] %vm465, %v260
    %483 = vst.msk [vmem:[%s3 + $0x18] sm:$0x1] %vm465, %v267
    %484 = vst.msk [vmem:[%s3 + $0x9] sm:$0x1] %vm465, %v288
    %485 = vst.msk [vmem:[%s3 + $0x19] sm:$0x1] %vm465, %v295
    %486 = vst.msk [vmem:[%s3 + $0xa] sm:$0x1] %vm465, %v316
    %487 = vst.msk [vmem:[%s3 + $0x1a] sm:$0x1] %vm465, %v323
    %488 = vst.msk [vmem:[%s3 + $0xb] sm:$0x1] %vm465, %v344
    %489 = vst.msk [vmem:[%s3 + $0x1b] sm:$0x1] %vm465, %v351
    %490 = vst.msk [vmem:[%s3 + $0xc] sm:$0x1] %vm465, %v373
    %491 = vst.msk [vmem:[%s3 + $0x1c] sm:$0x1] %vm465, %v380
    %492 = vst.msk [vmem:[%s3 + $0xd] sm:$0x1] %vm465, %v401
    %493 = vst.msk [vmem:[%s3 + $0x1d] sm:$0x1] %vm465, %v408
    %494 = vst.msk [vmem:[%s3 + $0xe] sm:$0x1] %vm465, %v429
    %495 = vst.msk [vmem:[%s3 + $0x1e] sm:$0x1] %vm465, %v436
    %496 = vst.msk [vmem:[%s3 + $0xf] sm:$0x1] %vm465, %v457
    %497 = vst.msk [vmem:[%s3 + $0x1f] sm:$0x1] %vm465, %v464
    %v498 = vmax.f32 %v34, %v62
    %v499 = vmax.f32 %v41, %v69
    %v500 = vmax.f32 %v498, %v147
    %v501 = vmax.f32 %v499, %v154
    %v502 = vmax.f32 %v500, %v175
    %v503 = vmax.f32 %v501, %v182
    %v504 = vmax.f32 %v90, %v118
    %v505 = vmax.f32 %v97, %v125
    %v506 = vmax.f32 %v504, %v203
    %v507 = vmax.f32 %v505, %v210
    %v508 = vmax.f32 %v506, %v231
    %v509 = vmax.f32 %v507, %v238
    %v510 = vmax.f32 %v260, %v288
    %v511 = vmax.f32 %v267, %v295
    %v512 = vmax.f32 %v510, %v373
    %v513 = vmax.f32 %v511, %v380
    %v514 = vmax.f32 %v512, %v401
    %v515 = vmax.f32 %v513, %v408
    %v516 = vmax.f32 %v316, %v344
    %v517 = vmax.f32 %v323, %v351
    %v518 = vmax.f32 %v516, %v429
    %v519 = vmax.f32 %v517, %v436
    %v520 = vmax.f32 %v518, %v457
    %v521 = vmax.f32 %v519, %v464
    %522 = vst.msk [vmem:[#allocation4] sm:$0x1] %vm465, %v502
    %523 = vst.msk [vmem:[#allocation4 + $0x4] sm:$0x1] %vm465, %v503
    %524 = vst.msk [vmem:[#allocation4 + $0x1] sm:$0x1] %vm465, %v508
    %525 = vst.msk [vmem:[#allocation4 + $0x5] sm:$0x1] %vm465, %v509
    %526 = vst.msk [vmem:[#allocation4 + $0x2] sm:$0x1] %vm465, %v514
    %527 = vst.msk [vmem:[#allocation4 + $0x6] sm:$0x1] %vm465, %v515
    %528 = vst.msk [vmem:[#allocation4 + $0x3] sm:$0x1] %vm465, %v520
    %529 = vst.msk [vmem:[#allocation4 + $0x7] sm:$0x1] %vm465, %v521
    %v530 = vmax.f32 %v502, %v508
    %v531 = vmax.f32 %v503, %v509
    %v532 = vmax.f32 %v530, %v514
    %v533 = vmax.f32 %v531, %v515
    %v534 = vmax.f32 %v532, %v520
    %v535 = vmax.f32 %v533, %v521
    %536 = vst.msk [vmem:[#allocation2] sm:$0x1] %vm465, %v534
    %537 = vst.msk [vmem:[#allocation2 + $0x1] sm:$0x1] %vm465, %v535
    // Predicated region
    $region6: #{tpu_custom_call.1} parent=1 // pred_check
      _
    $region7: #{tpu_custom_call.1} parent=1 // pred_check_branch
      %539 = sbr.rel (0) target = $region9
    $region8: #{tpu_custom_call.1} parent=1 // pred_region
      %s541 = ssub.s32 32, 32
      %542 = vsyncadd [#allocation3], %s541
      %s543 = sshll.u32 [#allocation2], 4
      %s544 = int_to_ptr.vmem [resolvable:$true] %s543
      %549 = dma.vmem_to_hbm [thread:$0]  %s544, 32, %s1, [#allocation3], 16, 16, 1
    $region9: #{tpu_custom_call.1} parent=1 // pred_fallthru
      _
    // Predicated region
    $region10: #{tpu_custom_call.1} parent=1 // pred_check
      _
    $region11: #{tpu_custom_call.1} parent=1 // pred_check_branch
      %551 = sbr.rel (0) target = $region13
    $region12: #{tpu_custom_call.1} parent=1 // pred_region
      %s553 = ssub.s32 128, 128
      %554 = vsyncadd [#allocation5], %s553
      %s555 = sshll.u32 [#allocation4], 4
      %s556 = int_to_ptr.vmem [resolvable:$true] %s555
      %561 = dma.vmem_to_hbm [thread:$0]  %s556, 128, %s2, [#allocation5], 64, 64, 4
    $region13: #{tpu_custom_call.1} parent=1 // pred_fallthru
      _
    // Predicated region
    $region14: #{tpu_custom_call.1} parent=1 // pred_check
      _
    $region15: #{tpu_custom_call.1} parent=1 // pred_check_branch
      %563 = sbr.rel (0) target = $region17
    $region16: #{tpu_custom_call.1} parent=1 // pred_region
      _
    $region17: #{tpu_custom_call.1} parent=1 // pred_fallthru
      _
    // Predicated region
    $region18: #{tpu_custom_call.1} parent=1 // pred_check
      _
    $region19: #{tpu_custom_call.1} parent=1 // pred_check_branch
      %565 = sbr.rel (0) target = $region21
    $region20: #{tpu_custom_call.1} parent=1 // pred_region
      %566 = dma.done [#allocation3], 32
    $region21: #{tpu_custom_call.1} parent=1 // pred_fallthru
      _
    // Predicated region
    $region22: #{tpu_custom_call.1} parent=1 // pred_check
      _
    $region23: #{tpu_custom_call.1} parent=1 // pred_check_branch
      %568 = sbr.rel (0) target = $region25
    $region24: #{tpu_custom_call.1} parent=1 // pred_region
      %569 = dma.done [#allocation5], 128
    $region25: #{tpu_custom_call.1} parent=1 // pred_fallthru
      _
    // Predicated region
    $region26: #{tpu_custom_call.1} parent=1 // pred_check
      _
    $region27: #{tpu_custom_call.1} parent=1 // pred_check_branch
      %571 = sbr.rel (0) target = $region29
    $region28: #{tpu_custom_call.1} parent=1 // pred_region
      _
    $region29: #{tpu_custom_call.1} parent=1 // pred_fallthru
      _
    %572 = vsyncpa [#allocation3], 1
    %573 = vsyncpa [#allocation5], 1

</llo_original>
